<compile_context>
chip_gen: v7x
topology: tpu7x:2x2x1
jax: 0.10.0
libtpu: 0.0.40
codegen_flags: <defaults>
</compile_context>

<pallas_src>
import numpy as np
import jax
import jax.numpy as jnp
from jax.experimental import pallas as pl
from jax.experimental.pallas import tpu as pltpu


# ---------------------------------------------------------------------------
# Host-side (numpy) precompute helpers
# ---------------------------------------------------------------------------

def _round_up(x, m):
    return ((x + m - 1) // m) * m


def _vmem_capacity():
    try:
        return int(pltpu.get_tpu_info().vmem_capacity_bytes)
    except Exception:
        return 64 * 1024 * 1024        # conservative (v7x per-core VMEM)


def _lowpass_mask(h, w, radius):
    """ifftshift-ed circular low-pass mask (applies to the unshifted spectrum)."""
    crow, ccol = h // 2, w // 2
    yy, xx = np.meshgrid(np.arange(h), np.arange(w), indexing="ij")
    m_shift = (((xx - ccol) ** 2 + (yy - crow) ** 2) <= radius ** 2).astype(np.float32)
    m = np.fft.ifftshift(m_shift)
    # The real-output shortcut used by both kernels requires the unshifted mask
    # to be symmetric under k -> -k (mod N); assert it (review correctness note).
    assert np.array_equal(m, m[(-np.arange(h)) % h][:, (-np.arange(w)) % w]), \
        "low-pass mask is not conjugate-symmetric; real-output shortcut invalid"
    return m


def _dft_parts(n):
    """Real/imag parts of the (symmetric) forward DFT matrix exp(-2*pi*i*j*k/n)."""
    k = np.arange(n)
    th = -2.0 * np.pi * np.outer(k, k) / n
    return np.cos(th).astype(np.float32), np.sin(th).astype(np.float32)


def _fused_operator(h, w, radius):
    """P^T with P the real (HW x HW) operator  x_flat -> ifft2(fft2(x)*mask)."""
    hw = h * w
    basis = np.eye(hw, dtype=np.float32).reshape(hw, h, w)
    spec = np.fft.fft2(basis) * _lowpass_mask(h, w, radius)
    return np.real(np.fft.ifft2(spec)).reshape(hw, hw).astype(np.float32)


def _compiler_params(vmem_estimate_bytes):
    kwargs = dict(dimension_semantics=("parallel",))
    cap = int(0.75 * _vmem_capacity())          # leave headroom for Mosaic scratch
    if vmem_estimate_bytes > 16 * 1024 * 1024:
        kwargs["vmem_limit_bytes"] = int(min(max(vmem_estimate_bytes,
                                                 32 * 1024 * 1024), cap))
    return pltpu.CompilerParams(**kwargs)


def _const_spec(shape):
    """BlockSpec for a grid-invariant operand; single-buffered when supported."""
    def imap(i):
        return (0,) * len(shape)
    try:
        return pl.BlockSpec(shape, imap, pipeline_mode=pl.Buffered(1))
    except (TypeError, AttributeError):
        return pl.BlockSpec(shape, imap)


def _pick_tb(b, cap=256):
    """Batch tile for the fused path: minimise padding, prefer >=2 grid steps."""
    cands = [t for t in (8, 16, 32, 64, 128, 256) if t <= cap] or [8]

    def key(t):
        bp = _round_up(b, t)
        return (bp - b, 0 if bp // t >= 2 else 1, -t)

    return min(cands, key=key)


# ---------------------------------------------------------------------------
# Path 1: fused single-matmul kernel (small images)
# ---------------------------------------------------------------------------

def _fused_kernel(x_ref, p_ref, o_ref):
    # (TB, HW) @ (HW, HW) -> (TB, HW); result is analytically real.
    o_ref[...] = jnp.abs(
        jnp.dot(x_ref[...], p_ref[...], preferred_element_type=jnp.float32))


def _fourier_fused(xb, h, w, radius):
    b = xb.shape[0]
    hw = h * w
    pt = jnp.asarray(_fused_operator(h, w, radius))            # (HW, HW) == P^T

    cap = max(8, min(256, (2 * 1024 * 1024) // max(1, hw * 4)))
    tb = _pick_tb(b, cap)
    bp = _round_up(b, tb)
    x2 = xb.reshape(b, hw)
    if bp != b:
        x2 = jnp.pad(x2, ((0, bp - b), (0, 0)))

    est = hw * hw * 4 + 4 * tb * hw * 4 + (1 << 20)            # P (1 buf) + blocks
    flops = 2 * bp * hw * hw
    bytes_accessed = (2 * bp * hw + hw * hw) * 4

    out = pl.pallas_call(
        _fused_kernel,
        out_shape=jax.ShapeDtypeStruct((bp, hw), jnp.float32),
        grid_spec=pltpu.PrefetchScalarGridSpec(
            num_scalar_prefetch=0,
            grid=(bp // tb,),
            in_specs=[
                pl.BlockSpec((tb, hw), lambda i: (i, 0)),       # batch tile
                _const_spec((hw, hw)),                          # constant operator
            ],
            out_specs=pl.BlockSpec((tb, hw), lambda i: (i, 0)),
        ),
        compiler_params=_compiler_params(est),
        cost_estimate=pl.CostEstimate(flops=int(flops), transcendentals=0,
                                      bytes_accessed=int(bytes_accessed)),
    )(x2, pt)
    return out[:b].reshape(b, h, w)


# ---------------------------------------------------------------------------
# Path 2: separable banded-DFT kernel, natural (tb, h, w) layout
# ---------------------------------------------------------------------------

def _separable_constants(h, w, radius):
    """Banded DFT matrices + mask band (padded), exploiting mask sparsity."""
    ar, ai = _dft_parts(h)
    br, bi = _dft_parts(w)
    mask = _lowpass_mask(h, w, radius)

    rows = np.flatnonzero(mask.any(axis=1))      # surviving spectrum rows
    cols = np.flatnonzero(mask.any(axis=0))      # surviving spectrum cols
    if rows.size == 0:
        rows, cols = np.array([0]), np.array([0])

    rb = min(h, _round_up(len(rows), 8))
    if rb == h:
        rows = np.arange(h)
    cb = min(w, _round_up(len(cols), 128)) if w >= 128 else w
    if cb == w:
        cols = np.arange(w)
    nr, nc = len(rows), len(cols)

    def pad_r(m, n):
        return np.pad(m, ((0, n - m.shape[0]), (0, 0)))

    def pad_c(m, n):
        return np.pad(m, ((0, 0), (0, n - m.shape[1])))

    arb, aib = pad_r(ar[rows, :], rb), pad_r(ai[rows, :], rb)      # (rb, h)
    arr_, air_ = pad_c(ar[:, rows], rb), pad_c(ai[:, rows], rb)    # (h, rb)
    brc, bic = pad_c(br[:, cols], cb), pad_c(bi[:, cols], cb)      # (w, cb)
    brr, bir = pad_r(br[cols, :], cb), pad_r(bi[cols, :], cb)      # (cb, w)
    mb = mask[np.ix_(rows, cols)] * np.float32(1.0 / (h * w))      # IFFT scale folded
    mb = np.pad(mb, ((0, rb - nr), (0, cb - nc)))                  # (rb, cb)

    consts = [arb, aib, arb + aib, arr_, air_, arr_ - air_,
              brc, bic, brr, bir, mb]
    return [np.ascontiguousarray(c, dtype=np.float32) for c in consts], rb, cb


def _make_separable_kernel(h, w, tb, rb, cb):
    def kernel(x_ref, arb_ref, aib_ref, asb_ref, arr_ref, air_ref, adr_ref,
               brc_ref, bic_ref, brr_ref, bir_ref, m_ref, o_ref):
        f32 = jnp.float32
        xs = x_ref[...].reshape(tb * h, w)       # natural sublane-stacked slab

        # Stage 1: column DFT band (right multiply; input real) -> (tb*h, cb)
        wr = jnp.dot(xs, brc_ref[...], preferred_element_type=f32)
        wi = jnp.dot(xs, bic_ref[...], preferred_element_type=f32)

        mb = m_ref[...]                          # (rb, cb), scale folded in

        if tb == 1:
            # Lane-dense 2-D path (the common large-image case).
            p1 = jnp.dot(arb_ref[...], wr, preferred_element_type=f32)
            p2 = jnp.dot(aib_ref[...], wi, preferred_element_type=f32)
            p3 = jnp.dot(asb_ref[...], wr + wi, preferred_element_type=f32)
            yr = (p1 - p2) * mb
            yi = (p3 - p1 - p2) * mb
            q1 = jnp.dot(arr_ref[...], yr, preferred_element_type=f32)
            q2 = jnp.dot(air_ref[...], yi, preferred_element_type=f32)
            q3 = jnp.dot(adr_ref[...], yr + yi, preferred_element_type=f32)
            pr = q1 + q2
            pi = q3 - q1 + q2
        else:
            # Batched 3-D path (small images packed per step); no transposes,
            # no concats, mask broadcast per image.
            wr3 = wr.reshape(tb, h, cb)
            wi3 = wi.reshape(tb, h, cb)
            arb = jnp.broadcast_to(arb_ref[...], (tb, rb, h))
            aib = jnp.broadcast_to(aib_ref[...], (tb, rb, h))
            asb = jnp.broadcast_to(asb_ref[...], (tb, rb, h))
            p1 = jnp.einsum('trk,tkc->trc', arb, wr3, preferred_element_type=f32)
            p2 = jnp.einsum('trk,tkc->trc', aib, wi3, preferred_element_type=f32)
            p3 = jnp.einsum('trk,tkc->trc', asb, wr3 + wi3,
                            preferred_element_type=f32)
            yr = (p1 - p2) * mb
            yi = (p3 - p1 - p2) * mb
            arr = jnp.broadcast_to(arr_ref[...], (tb, h, rb))
            air = jnp.broadcast_to(air_ref[...], (tb, h, rb))
            adr = jnp.broadcast_to(adr_ref[...], (tb, h, rb))
            q1 = jnp.einsum('thr,trc->thc', arr, yr, preferred_element_type=f32)
            q2 = jnp.einsum('thr,trc->thc', air, yi, preferred_element_type=f32)
            q3 = jnp.einsum('thr,trc->thc', adr, yr + yi,
                            preferred_element_type=f32)
            pr = (q1 + q2).reshape(tb * h, cb)
            pi = (q3 - q1 + q2).reshape(tb * h, cb)

        # Stage 5: inverse column DFT; output is analytically real -> 2 matmuls.
        zr = (jnp.dot(pr, brr_ref[...], preferred_element_type=f32)
              + jnp.dot(pi, bir_ref[...], preferred_element_type=f32))
        o_ref[...] = jnp.abs(zr).reshape(tb, h, w)

    return kernel


def _fourier_separable(xb, h, w, radius):
    b = xb.shape[0]

    # Pack a few images per grid step only when h is small (amortises per-step
    # overhead and fills MXU rows); per-matmul lane density is set by cb/w.
    tb = 1
    while tb * h < 128 and 2 * tb <= min(64, max(1, b)):
        tb *= 2
    bp = _round_up(b, tb)
    if bp != b:
        xb = jnp.pad(xb, ((0, bp - b), (0, 0), (0, 0)))

    consts, rb, cb = _separable_constants(h, w, radius)
    const_arrs = [jnp.asarray(c) for c in consts]
    const_specs = [_const_spec(c.shape) for c in consts]

    n_steps = bp // tb
    blk = tb * h * w * 4
    const_bytes = sum(c.size for c in consts) * 4
    est = 4 * blk + 2 * const_bytes + 18 * blk                  # io + consts + temps
    flops = n_steps * 2 * (2 * tb * h * w * cb + 6 * tb * rb * h * cb
                           + 2 * tb * h * cb * w)
    bytes_accessed = 2 * bp * h * w * 4 + const_bytes

    out = pl.pallas_call(
        _make_separable_kernel(h, w, tb, rb, cb),
        out_shape=jax.ShapeDtypeStruct((bp, h, w), jnp.float32),
        grid_spec=pltpu.PrefetchScalarGridSpec(
            num_scalar_prefetch=0,
            grid=(n_steps,),
            in_specs=[pl.BlockSpec((tb, h, w), lambda i: (i, 0, 0))] + const_specs,
            out_specs=pl.BlockSpec((tb, h, w), lambda i: (i, 0, 0)),
        ),
        compiler_params=_compiler_params(est),
        cost_estimate=pl.CostEstimate(flops=int(flops), transcendentals=0,
                                      bytes_accessed=int(bytes_accessed)),
    )(xb, *const_arrs)
    return out[:b]


# ---------------------------------------------------------------------------
# Public wrapper (matches FourierRegularizer.forward)
# ---------------------------------------------------------------------------

def fourier_regularizer(x: jax.Array, filter_radius: int = 25,
                        path: str = "auto") -> jax.Array:
    """x: (N, C, H, W) -> (N, C, H, W) float32 magnitudes."""
    n, c, h, w = x.shape
    b = n * c
    xb = x.reshape(b, h, w).astype(jnp.float32)
    if path == "auto":
        hw = h * w
        budget = 0.30 * _vmem_capacity()
        path = "fused" if (hw <= 3072 and hw * hw * 4 <= budget) else "separable"
    if path == "fused":
        out = _fourier_fused(xb, h, w, filter_radius)
    else:
        out = _fourier_separable(xb, h, w, filter_radius)
    return out.reshape(n, c, h, w)


# ---------------------------------------------------------------------------
# Reference + self-test
# ---------------------------------------------------------------------------

def _reference(x, radius):
    h, w = x.shape[-2:]
    m = jnp.asarray(_lowpass_mask(h, w, radius))
    return jnp.abs(jnp.fft.ifft2(jnp.fft.fft2(x) * m))


if __name__ == "__main__":
    key = jax.random.PRNGKey(0)
    k1, k2, k3 = jax.random.split(key, 3)

    # 1) Primary module shape -> fused single-matmul path.  filter_radius=5
    #    keeps the 16x16 mask non-trivial (the default 25 passes everything).
    x1 = jax.random.normal(k1, (2, 4, 16, 16), dtype=jnp.float32)
    out1 = jax.block_until_ready(fourier_regularizer(x1, filter_radius=5))
    assert out1.shape == x1.shape
    np.testing.assert_allclose(np.asarray(out1), np.asarray(_reference(x1, 5)),
                               atol=5e-4, rtol=5e-4)

    # 2) Larger image -> separable path (tb=1, row+column band pruning active).
    x2 = jax.random.normal(k2, (1, 1, 256, 256), dtype=jnp.float32)
    out2 = jax.block_until_ready(fourier_regularizer(x2, filter_radius=20))
    np.testing.assert_allclose(np.asarray(out2), np.asarray(_reference(x2, 20)),
                               atol=1e-3, rtol=1e-3)

    # 3) Small-w images -> separable path with tb>1 (batched 3-D matmuls),
    #    row-band pruning, and batch padding (b=6 -> bp=8, 2 grid steps).
    x3 = jax.random.normal(k3, (2, 3, 32, 64), dtype=jnp.float32)
    out3 = jax.block_until_ready(
        fourier_regularizer(x3, filter_radius=10, path="separable"))
    np.testing.assert_allclose(np.asarray(out3), np.asarray(_reference(x3, 10)),
                               atol=1e-3, rtol=1e-3)

    print("KERNEL_OK")
</pallas_src>

<mosaic_0001>
module attributes {stable_mosaic.version = 11 : i64} {
  func.func @_fused_kernel(%arg0: i32, %arg1: memref<8x256xf32, #tpu.memory_space<vmem>>, %arg2: memref<256x256xf32, #tpu.memory_space<vmem>>, %arg3: memref<8x256xf32, #tpu.memory_space<vmem>>) attributes {dimension_semantics = [#tpu.dimension_semantics<parallel>], iteration_bounds = array<i64: 1>, scalar_prefetch = 0 : i64, scratch_operands = 0 : i64, tpu.core_type = #tpu.core_type<tc>, window_params = [{transform_indices = @transform_0, window_bounds = array<i64: 8, 256>}, {pipeline_mode = #tpu.pipeline_mode<synchronous>, transform_indices = @transform_1, window_bounds = array<i64: 256, 256>}, {transform_indices = @transform_2, window_bounds = array<i64: 8, 256>}]} {
    %c0 = arith.constant 0 : index
    %c0_0 = arith.constant 0 : index
    %0 = vector.load %arg1[%c0, %c0_0] : memref<8x256xf32, #tpu.memory_space<vmem>>, vector<8x256xf32>
    %c0_1 = arith.constant 0 : index
    %c0_2 = arith.constant 0 : index
    %1 = vector.load %arg2[%c0_1, %c0_2] : memref<256x256xf32, #tpu.memory_space<vmem>>, vector<256x256xf32>
    %cst = arith.constant dense<0.000000e+00> : vector<8x256xf32>
    %2 = tpu.matmul %0, %1, %cst {dimension_numbers = #tpu.dot_dimension_numbers<[1], [0], [0], [1], [0, 0, 1, 1], [], []>} : vector<8x256xf32>, vector<256x256xf32>, vector<8x256xf32> -> vector<8x256xf32>
    %3 = math.absf %2 : vector<8x256xf32>
    %c0_3 = arith.constant 0 : index
    %c0_4 = arith.constant 0 : index
    %4 = vector.load %arg3[%c0_3, %c0_4] : memref<8x256xf32, #tpu.memory_space<vmem>>, vector<8x256xf32>
    tpu.vector_store %arg3[%c0_3, %c0_4], %3 {strides = array<i32>} : memref<8x256xf32, #tpu.memory_space<vmem>>, vector<8x256xf32>,
    return
  }
  func.func @transform_0(%arg0: i32) -> (i32, i32) {
    %c0_i32 = arith.constant 0 : i32
    %c0_i32_0 = arith.constant 0 : i32
    return %arg0, %c0_i32 : i32, i32
  }
  func.func @transform_1(%arg0: i32) -> (i32, i32) {
    %c0_i32 = arith.constant 0 : i32
    %c0_i32_0 = arith.constant 0 : i32
    %c0_i32_1 = arith.constant 0 : i32
    return %c0_i32, %c0_i32_0 : i32, i32
  }
  func.func @transform_2(%arg0: i32) -> (i32, i32) {
    %c0_i32 = arith.constant 0 : i32
    %c0_i32_0 = arith.constant 0 : i32
    return %arg0, %c0_i32 : i32, i32
  }
}

</mosaic_0001>

<llo_original>
// kernel: tpu_custom_call.1
$region0: #{tpu_custom_call.1}
  #allocation0 [shape = 'u32[]', space=smem, size = 0x4, offset = 0x4, fixed_abs, tag = 'smem constant byte address 0x4 - core index']
  #allocation1 [shape = 'u32[144,128]{1,0:T(1,128)}', space=vmem, size = 0x12000, scoped, tag = 'internal scratch']
  %s0 = inlined_call_operand.hbm [shape: f32[8,256], index: 0, kind: input, shape index: {}]
  %s1 = inlined_call_operand.hbm [shape: f32[256,256], index: 1, kind: input, shape index: {}]
  %s2 = inlined_call_operand.hbm [shape: f32[8,256], index: 2, kind: output, shape index: {}]
  %s3 = sld [smem:[#allocation0]]
  $region26: #{tpu_custom_call.1} parent=0
    _
  %s5 = ssub.s32 1, %s3
  %s6 = scalar_select 0, %s5, %s3
  $region1: #{tpu_custom_call.1} parent=0
    #allocation2 [shape = 'u8[8192]{0}', space=vmem, size = 0x2000, scoped, tag = 'input window, operand 0, single buffered']
    #allocation3 [shape = 's32[1]{0}', space=sflag, size = 0x4, scoped, tag = 'scoped memory for tpu_custom_call.1']
    #allocation4 [shape = 's32[1]{0}', space=sflag, size = 0x4, scoped, tag = 'scoped memory for tpu_custom_call.1']
    #allocation5 [shape = 'u8[262144]{0}', space=vmem, size = 0x40000, scoped, tag = 'input window, operand 1, single buffered']
    #allocation6 [shape = 's32[1]{0}', space=sflag, size = 0x4, scoped, tag = 'scoped memory for tpu_custom_call.1']
    #allocation7 [shape = 'u8[8192]{0}', space=vmem, size = 0x2000, scoped, tag = 'output window, operand 0, single buffered']
    %7 = vsyncpa [#allocation3], 0
    %8 = vsyncpa [#allocation6], 0
    %9 = vsyncpa [#allocation4], 0
    // Predicated region
    $region2: #{tpu_custom_call.1} parent=1 // pred_check
      _
    $region3: #{tpu_custom_call.1} parent=1 // pred_check_branch
      %11 = sbr.rel (0) target = $region5
    $region4: #{tpu_custom_call.1} parent=1 // pred_region
      %s13 = ssub.s32 256, 256
      %14 = vsyncadd [#allocation3], %s13
      %s16 = sshll.u32 [#allocation2], 4
      %s17 = int_to_ptr.vmem [resolvable:$true] %s16
      %19 = dma.hbm_to_vmem [thread:$0]  %s0, 256, %s17, [#allocation3]
    $region5: #{tpu_custom_call.1} parent=1 // pred_fallthru
      _
    // Predicated region
    $region6: #{tpu_custom_call.1} parent=1 // pred_check
      _
    $region7: #{tpu_custom_call.1} parent=1 // pred_check_branch
      %21 = sbr.rel (0) target = $region9
    $region8: #{tpu_custom_call.1} parent=1 // pred_region
      %s23 = ssub.s32 8192, 8192
      %24 = vsyncadd [#allocation6], %s23
      %s25 = sshll.u32 [#allocation5], 4
      %s26 = int_to_ptr.vmem [resolvable:$true] %s25
      %31 = dma.hbm_to_vmem [thread:$0]  %s1, 8192, %s26, [#allocation6], 256, 256, 16
    $region9: #{tpu_custom_call.1} parent=1 // pred_fallthru
      _
    // Predicated region
    $region10: #{tpu_custom_call.1} parent=1 // pred_check
      _
    $region11: #{tpu_custom_call.1} parent=1 // pred_check_branch
      %33 = sbr.rel (0) target = $region13
    $region12: #{tpu_custom_call.1} parent=1 // pred_region
      %34 = dma.done [#allocation3], 256
    $region13: #{tpu_custom_call.1} parent=1 // pred_fallthru
      _
    // Predicated region
    $region14: #{tpu_custom_call.1} parent=1 // pred_check
      _
    $region15: #{tpu_custom_call.1} parent=1 // pred_check_branch
      %36 = sbr.rel (0) target = $region17
    $region16: #{tpu_custom_call.1} parent=1 // pred_region
      %37 = dma.done [#allocation6], 8192
    $region17: #{tpu_custom_call.1} parent=1 // pred_fallthru
      _
    %v38 = vld [vmem:[#allocation2] sm:$0xff]
    %v39 = vld [vmem:[#allocation2 + $0x8] sm:$0xff]
    %v40 = vld [vmem:[#allocation5] sm:$0xff]
    %v41 = vld [vmem:[#allocation5 + $0x8] sm:$0xff]
    %v42 = vld [vmem:[#allocation5 + $0x10] sm:$0xff]
    %v43 = vld [vmem:[#allocation5 + $0x18] sm:$0xff]
    %v44 = vld [vmem:[#allocation5 + $0x20] sm:$0xff]
    %v45 = vld [vmem:[#allocation5 + $0x28] sm:$0xff]
    %v46 = vld [vmem:[#allocation5 + $0x30] sm:$0xff]
    %v47 = vld [vmem:[#allocation5 + $0x38] sm:$0xff]
    %v48 = vld [vmem:[#allocation5 + $0x40] sm:$0xff]
    %v49 = vld [vmem:[#allocation5 + $0x48] sm:$0xff]
    %v50 = vld [vmem:[#allocation5 + $0x50] sm:$0xff]
    %v51 = vld [vmem:[#allocation5 + $0x58] sm:$0xff]
    %v52 = vld [vmem:[#allocation5 + $0x60] sm:$0xff]
    %v53 = vld [vmem:[#allocation5 + $0x68] sm:$0xff]
    %v54 = vld [vmem:[#allocation5 + $0x70] sm:$0xff]
    %v55 = vld [vmem:[#allocation5 + $0x78] sm:$0xff]
    %v56 = vld [vmem:[#allocation5 + $0x80] sm:$0xff]
    %v57 = vld [vmem:[#allocation5 + $0x88] sm:$0xff]
    %v58 = vld [vmem:[#allocation5 + $0x90] sm:$0xff]
    %v59 = vld [vmem:[#allocation5 + $0x98] sm:$0xff]
    %v60 = vld [vmem:[#allocation5 + $0xa0] sm:$0xff]
    %v61 = vld [vmem:[#allocation5 + $0xa8] sm:$0xff]
    %v62 = vld [vmem:[#allocation5 + $0xb0] sm:$0xff]
    %v63 = vld [vmem:[#allocation5 + $0xb8] sm:$0xff]
    %v64 = vld [vmem:[#allocation5 + $0xc0] sm:$0xff]
    %v65 = vld [vmem:[#allocation5 + $0xc8] sm:$0xff]
    %v66 = vld [vmem:[#allocation5 + $0xd0] sm:$0xff]
    %v67 = vld [vmem:[#allocation5 + $0xd8] sm:$0xff]
    %v68 = vld [vmem:[#allocation5 + $0xe0] sm:$0xff]
    %v69 = vld [vmem:[#allocation5 + $0xe8] sm:$0xff]
    %v70 = vld [vmem:[#allocation5 + $0xf0] sm:$0xff]
    %v71 = vld [vmem:[#allocation5 + $0xf8] sm:$0xff]
    %v72 = vld [vmem:[#allocation5 + $0x100] sm:$0xff]
    %v73 = vld [vmem:[#allocation5 + $0x108] sm:$0xff]
    %v74 = vld [vmem:[#allocation5 + $0x110] sm:$0xff]
    %v75 = vld [vmem:[#allocation5 + $0x118] sm:$0xff]
    %v76 = vld [vmem:[#allocation5 + $0x120] sm:$0xff]
    %v77 = vld [vmem:[#allocation5 + $0x128] sm:$0xff]
    %v78 = vld [vmem:[#allocation5 + $0x130] sm:$0xff]
    %v79 = vld [vmem:[#allocation5 + $0x138] sm:$0xff]
    %v80 = vld [vmem:[#allocation5 + $0x140] sm:$0xff]
    %v81 = vld [vmem:[#allocation5 + $0x148] sm:$0xff]
    %v82 = vld [vmem:[#allocation5 + $0x150] sm:$0xff]
    %v83 = vld [vmem:[#allocation5 + $0x158] sm:$0xff]
    %v84 = vld [vmem:[#allocation5 + $0x160] sm:$0xff]
    %v85 = vld [vmem:[#allocation5 + $0x168] sm:$0xff]
    %v86 = vld [vmem:[#allocation5 + $0x170] sm:$0xff]
    %v87 = vld [vmem:[#allocation5 + $0x178] sm:$0xff]
    %v88 = vld [vmem:[#allocation5 + $0x180] sm:$0xff]
    %v89 = vld [vmem:[#allocation5 + $0x188] sm:$0xff]
    %v90 = vld [vmem:[#allocation5 + $0x190] sm:$0xff]
    %v91 = vld [vmem:[#allocation5 + $0x198] sm:$0xff]
    %v92 = vld [vmem:[#allocation5 + $0x1a0] sm:$0xff]
    %v93 = vld [vmem:[#allocation5 + $0x1a8] sm:$0xff]
    %v94 = vld [vmem:[#allocation5 + $0x1b0] sm:$0xff]
    %v95 = vld [vmem:[#allocation5 + $0x1b8] sm:$0xff]
    %v96 = vld [vmem:[#allocation5 + $0x1c0] sm:$0xff]
    %v97 = vld [vmem:[#allocation5 + $0x1c8] sm:$0xff]
    %v98 = vld [vmem:[#allocation5 + $0x1d0] sm:$0xff]
    %v99 = vld [vmem:[#allocation5 + $0x1d8] sm:$0xff]
    %v100 = vld [vmem:[#allocation5 + $0x1e0] sm:$0xff]
    %v101 = vld [vmem:[#allocation5 + $0x1e8] sm:$0xff]
    %v102 = vld [vmem:[#allocation5 + $0x1f0] sm:$0xff]
    %v103 = vld [vmem:[#allocation5 + $0x1f8] sm:$0xff]
    %104 = vmatprep.subr.mxu0 %v41
    %105 = vmatpush1.msra.mxu0 %v40
    %106 = vmatprep.subr.mxu0 %v43
    %107 = vmatpush1.msra.mxu0 %v42
    %108 = vmatprep.subr.mxu0 %v45
    %109 = vmatpush1.msra.mxu0 %v44
    %110 = vmatprep.subr.mxu0 %v47
    %111 = vmatpush1.msra.mxu0 %v46
    %112 = vmatprep.subr.mxu0 %v49
    %113 = vmatpush1.msra.mxu0 %v48
    %114 = vmatprep.subr.mxu0 %v51
    %115 = vmatpush1.msra.mxu0 %v50
    %116 = vmatprep.subr.mxu0 %v53
    %117 = vmatpush1.msra.mxu0 %v52
    %118 = vmatprep.subr.mxu0 %v55
    %119 = vmatpush1.msra.mxu0 %v54
    %120 = vmatprep.subr.mxu0 %v57
    %121 = vmatpush1.msra.mxu0 %v56
    %122 = vmatprep.subr.mxu0 %v59
    %123 = vmatpush1.msra.mxu0 %v58
    %124 = vmatprep.subr.mxu0 %v61
    %125 = vmatpush1.msra.mxu0 %v60
    %126 = vmatprep.subr.mxu0 %v63
    %127 = vmatpush1.msra.mxu0 %v62
    %128 = vmatprep.subr.mxu0 %v65
    %129 = vmatpush1.msra.mxu0 %v64
    %130 = vmatprep.subr.mxu0 %v67
    %131 = vmatpush1.msra.mxu0 %v66
    %132 = vmatprep.subr.mxu0 %v69
    %133 = vmatpush1.msra.mxu0 %v68
    %134 = vmatprep.subr.mxu0 %v71
    %135 = vmatpush1.msra.mxu0 %v70
    %136 = vmatprep.subr.mxu0 %v73
    %137 = vmatpush1.msra.mxu0 %v72
    %138 = vmatprep.subr.mxu0 %v75
    %139 = vmatpush1.msra.mxu0 %v74
    %140 = vmatprep.subr.mxu0 %v77
    %141 = vmatpush1.msra.mxu0 %v76
    %142 = vmatprep.subr.mxu0 %v79
    %143 = vmatpush1.msra.mxu0 %v78
    %144 = vmatprep.subr.mxu0 %v81
    %145 = vmatpush1.msra.mxu0 %v80
    %146 = vmatprep.subr.mxu0 %v83
    %147 = vmatpush1.msra.mxu0 %v82
    %148 = vmatprep.subr.mxu0 %v85
    %149 = vmatpush1.msra.mxu0 %v84
    %150 = vmatprep.subr.mxu0 %v87
    %151 = vmatpush1.msra.mxu0 %v86
    %152 = vmatprep.subr.mxu0 %v89
    %153 = vmatpush1.msra.mxu0 %v88
    %154 = vmatprep.subr.mxu0 %v91
    %155 = vmatpush1.msra.mxu0 %v90
    %156 = vmatprep.subr.mxu0 %v93
    %157 = vmatpush1.msra.mxu0 %v92
    %158 = vmatprep.subr.mxu0 %v95
    %159 = vmatpush1.msra.mxu0 %v94
    %160 = vmatprep.subr.mxu0 %v97
    %161 = vmatpush1.msra.mxu0 %v96
    %162 = vmatprep.subr.mxu0 %v99
    %163 = vmatpush1.msra.mxu0 %v98
    %164 = vmatprep.subr.mxu0 %v101
    %165 = vmatpush1.msra.mxu0 %v100
    %166 = vmatprep.subr.mxu0 %v103
    %167 = vmatpush1.msra.mxu0 %v102
    %168 = vmatprep.mubr.f32.mxu0 %v39
    %169 = vmatmul.mubr.f32.gmra.mrb[0].mxu0 %v38
    %v170 = vpop.f32.mrb[0].mxu0
    %v171 = vadd.f32 0.0, %v170
    %v172 = vpop.f32.mrb[0].mxu0
    %v173 = vadd.f32 0.0, %v172
    %174 = vdwg.mxu0
    %v175 = vand.u32 2147483647, %v171
    %v176 = vand.u32 2147483647, %v173
    %177 = vst [vmem:[#allocation7] sm:$0xff] %v175
    %178 = vst [vmem:[#allocation7 + $0x8] sm:$0xff] %v176
    // Predicated region
    $region18: #{tpu_custom_call.1} parent=1 // pred_check
      _
    $region19: #{tpu_custom_call.1} parent=1 // pred_check_branch
      %180 = sbr.rel (0) target = $region21
    $region20: #{tpu_custom_call.1} parent=1 // pred_region
      %s182 = ssub.s32 256, 256
      %183 = vsyncadd [#allocation4], %s182
      %s185 = sshll.u32 [#allocation7], 4
      %s186 = int_to_ptr.vmem [resolvable:$true] %s185
      %188 = dma.vmem_to_hbm [thread:$0]  %s186, 256, %s2, [#allocation4]
    $region21: #{tpu_custom_call.1} parent=1 // pred_fallthru
      _
    // Predicated region
    $region22: #{tpu_custom_call.1} parent=1 // pred_check
      _
    $region23: #{tpu_custom_call.1} parent=1 // pred_check_branch
      %190 = sbr.rel (0) target = $region25
    $region24: #{tpu_custom_call.1} parent=1 // pred_region
      %191 = dma.done [#allocation4], 256
    $region25: #{tpu_custom_call.1} parent=1 // pred_fallthru
      _
    %192 = vsyncpa [#allocation3], 1
    %193 = vsyncpa [#allocation6], 1
    %194 = vsyncpa [#allocation4], 1

</llo_original>
